<compile_context>
chip_gen: v5e
topology: v5e:2x2
jax: 0.10.0
libtpu: 0.0.40
codegen_flags: <defaults>
</compile_context>

<pallas_src>
import functools

import jax
import jax.numpy as jnp
from jax.experimental import pallas as pl
from jax.experimental.pallas import tpu as pltpu


# ----------------------------- config ---------------------------------------
DMODEL = 32
DQ = DK = DV = 8
HEADS = 4                     # heads * dq == dmodel here (nice shapes)
HD = HEADS * DQ               # 32 (per-projection output width)
FEEDFORWARD = 64
DHALF = DMODEL // 2           # 16
VOCAB_SIZE = 50
VOCAB_PAD = 64                # embedding table padded to a clean K dim
NUM_BIO_LABELS = 77
LABELS_PAD = 128              # lane-dense padded head width
UNK_IDX = 1
LN_EPS = 1e-5

D_BATCH = 2                   # "d" in the PyTorch docstring
SEQ_N = 8                     # "n"


# ----------------------------- helpers --------------------------------------
def position_encoding(n, dmodel):
    """Exact port of positionEncoding() from models.py (single (n, dmodel) slab)."""
    pos = jnp.arange(n, dtype=jnp.float32)
    power = jnp.arange(0, dmodel, 2, dtype=jnp.float32) / float(dmodel)   # (dmodel//2,)
    denom = jnp.power(10000.0, power)                                     # (dmodel//2,)
    angles = pos[:, None] / denom[None, :]                                # (n, dmodel//2)
    enc = jnp.zeros((n, dmodel), dtype=jnp.float32)
    enc = enc.at[:, 0::2].set(jnp.sin(angles))
    enc = enc.at[:, 1::2].set(jnp.cos(angles))
    return enc


def _layernorm(x, gamma, beta):
    mu = jnp.mean(x, axis=-1, keepdims=True)
    var = jnp.mean(jnp.square(x - mu), axis=-1, keepdims=True)
    return (x - mu) * jax.lax.rsqrt(var + LN_EPS) * gamma + beta


# ----------------------------- Pallas kernel --------------------------------
def genia_kernel(idx_ref, pe_ref, emb_ref, wqkv_ref, wa_ref, wf2_ref, wh2_ref,
                 b_ref, out_ref, *, bt, n):
    m = bt * n

    # ---- embedding gather (one-hot matmul on the VMEM table) + pos enc ----
    idx = idx_ref[0]                                               # (m, 1) int32
    idx = jnp.where(idx >= VOCAB_SIZE, UNK_IDX, idx)               # UNK clamp
    onehot = (idx == jax.lax.broadcasted_iota(jnp.int32, (m, VOCAB_PAD), 1)
              ).astype(jnp.float32)                                # (m, VOCAB_PAD)
    x = jnp.dot(onehot, emb_ref[...], preferred_element_type=jnp.float32)
    x = x + pe_ref[...]                                            # (m, dmodel)

    # ---- attention (NO softmax -- matches the reference exactly) ----
    qkv = jnp.dot(x, wqkv_ref[...], preferred_element_type=jnp.float32)
    qkv = (qkv + b_ref[0:1, 0:3 * HD]).reshape(bt, n, 3 * HD)
    q = qkv[:, :, 0:HD] * (1.0 / DK ** 0.5)      # 1/sqrt(dk) folded into q
    k = qkv[:, :, HD:2 * HD]
    v = qkv[:, :, 2 * HD:3 * HD]
    scores = jnp.einsum("bqd,bkd->bqk", q, k, preferred_element_type=jnp.float32)
    attn = jnp.einsum("bqk,bkd->bqd", scores, v, preferred_element_type=jnp.float32)
    attn = attn.reshape(m, HD)

    # ---- packed weight slab: Wu | Wf1 | Wh1 ----
    wu = wa_ref[:, 0:DMODEL]
    wf1 = wa_ref[:, DMODEL:DMODEL + FEEDFORWARD]
    wh1 = wa_ref[:, DMODEL + FEEDFORWARD:DMODEL + FEEDFORWARD + DHALF]

    unified = jnp.dot(attn, wu, preferred_element_type=jnp.float32) + b_ref[1:2, 0:DMODEL]

    # ---- add & norm 1 ----
    h1 = _layernorm(x + unified, b_ref[2:3, 0:DMODEL], b_ref[3:4, 0:DMODEL])

    # ---- encoder feed-forward ----
    ff = jnp.maximum(
        jnp.dot(h1, wf1, preferred_element_type=jnp.float32) + b_ref[4:5, 0:FEEDFORWARD], 0.0)
    ff = jnp.dot(ff, wf2_ref[...], preferred_element_type=jnp.float32) + b_ref[5:6, 0:DMODEL]

    # ---- add & norm 2 ----
    h2 = _layernorm(h1 + ff, b_ref[6:7, 0:DMODEL], b_ref[7:8, 0:DMODEL])

    # ---- classification head (output padded to 128 lanes) ----
    hh = jnp.maximum(
        jnp.dot(h2, wh1, preferred_element_type=jnp.float32) + b_ref[8:9, 0:DHALF], 0.0)
    logits = jnp.dot(hh, wh2_ref[...], preferred_element_type=jnp.float32) + b_ref[9:10, :]

    # ---- final layernorm (stats over the 77 real columns only) + sigmoid ----
    lane = jax.lax.broadcasted_iota(jnp.int32, (m, LABELS_PAD), 1)
    mask = (lane < NUM_BIO_LABELS).astype(jnp.float32)
    cnt = float(NUM_BIO_LABELS)
    mu = jnp.sum(logits * mask, axis=-1, keepdims=True) / cnt
    var = jnp.sum(jnp.square(logits - mu) * mask, axis=-1, keepdims=True) / cnt
    y = (logits - mu) * jax.lax.rsqrt(var + LN_EPS) * b_ref[10:11, :] + b_ref[11:12, :]
    out_ref[0] = jax.nn.sigmoid(y)


# ----------------------------- weight packing --------------------------------
def _pad_lanes(v, width):
    v = jnp.asarray(v, jnp.float32).reshape(1, -1)
    return jnp.pad(v, ((0, 0), (0, width - v.shape[1])))


def pack_params(params):
    emb = jnp.asarray(params["embedding"], jnp.float32)
    emb_pad = jnp.pad(emb, ((0, VOCAB_PAD - emb.shape[0]), (0, 0)))               # (64, 32)

    w_qkv = jnp.concatenate([params["wq"], params["wk"], params["wv"]], axis=1)   # (32, 96)
    w_a = jnp.concatenate([params["wu"], params["wf1"], params["wh1"]], axis=1)   # (32, 112)
    w_f2 = jnp.asarray(params["wf2"], jnp.float32)                                # (64, 32)
    w_h2 = jnp.pad(jnp.asarray(params["wh2"], jnp.float32),
                   ((0, 0), (0, LABELS_PAD - NUM_BIO_LABELS)))                    # (16, 128)

    bias_rows = [
        jnp.concatenate([params["bq"], params["bk"], params["bv"]], axis=1),  # 0: fused qkv bias
        params["bu"],    # 1
        params["g1"],    # 2
        params["bb1"],   # 3
        params["bf1"],   # 4
        params["bf2"],   # 5
        params["g2"],    # 6
        params["bb2"],   # 7
        params["bh1"],   # 8
        params["bh2"],   # 9  (zero-padded to 128)
        params["gn"],    # 10 (zero-padded to 128; padded lanes are sliced away)
        params["bn"],    # 11 (zero-padded to 128)
    ]
    slab = jnp.concatenate([_pad_lanes(r, LABELS_PAD) for r in bias_rows], axis=0)
    slab = jnp.pad(slab, ((0, 16 - slab.shape[0]), (0, 0)))                       # (16, 128)
    return emb_pad, w_qkv, w_a, w_f2, w_h2, slab


# ----------------------------- wrapper ---------------------------------------
def genia_transformer(input_indices, params):
    """input_indices: (d, n) int32.  Returns (d, n, NUM_BIO_LABELS) float32."""
    d, n = input_indices.shape

    # ---- batch-tile so each grid step feeds the MXU a tall M = bt*n ----
    rows_target = 256                                  # >=128 (v5e) / 256 (v6e/v7x)
    bt = max(1, min(d, rows_target // max(n, 1)))
    nb = pl.cdiv(d, bt)
    # keep >=2 grid steps (v7x megacore) only if each half still fills the MXU
    if nb == 1 and d >= 2 and pl.cdiv(d, 2) * n >= 128:
        bt = pl.cdiv(d, 2)
        nb = 2
    d_pad = nb * bt
    m = bt * n

    idx = jnp.asarray(input_indices, jnp.int32)
    idx = jnp.pad(idx, ((0, d_pad - d), (0, 0)))       # pad rows -> index 0 (valid)
    idx = idx.reshape(nb, m, 1)

    pe = jnp.tile(position_encoding(n, DMODEL), (bt, 1))        # (m, dmodel), per-block

    emb_pad, w_qkv, w_a, w_f2, w_h2, bias_slab = pack_params(params)

    def full_spec(a):
        nd = a.ndim
        return pl.BlockSpec(a.shape, lambda i, _nd=nd: (0,) * _nd)

    kernel = functools.partial(genia_kernel, bt=bt, n=n)

    out = pl.pallas_call(
        kernel,
        out_shape=jax.ShapeDtypeStruct((nb, m, LABELS_PAD), jnp.float32),
        grid=(nb,),
        in_specs=[pl.BlockSpec((1, m, 1), lambda i: (i, 0, 0)),
                  full_spec(pe), full_spec(emb_pad), full_spec(w_qkv),
                  full_spec(w_a), full_spec(w_f2), full_spec(w_h2),
                  full_spec(bias_slab)],
        out_specs=pl.BlockSpec((1, m, LABELS_PAD), lambda i: (i, 0, 0)),
        compiler_params=pltpu.CompilerParams(dimension_semantics=("parallel",)),
    )(idx, pe, emb_pad, w_qkv, w_a, w_f2, w_h2, bias_slab)

    out = out.reshape(d_pad, n, LABELS_PAD)
    return out[:d, :, :NUM_BIO_LABELS]


# ----------------------------- pure-JAX reference -----------------------------
def genia_reference(input_indices, params):
    d, n = input_indices.shape
    idx = jnp.where(input_indices >= VOCAB_SIZE, UNK_IDX, input_indices)
    x = params["embedding"][idx] + position_encoding(n, DMODEL)[None]

    q = x @ params["wq"] + params["bq"]
    k = x @ params["wk"] + params["bk"]
    v = x @ params["wv"] + params["bv"]
    scores = jnp.einsum("bqd,bkd->bqk", q, k) / (DK ** 0.5)
    attn = jnp.einsum("bqk,bkd->bqd", scores, v)
    unified = attn @ params["wu"] + params["bu"]
    h1 = _layernorm(x + unified, params["g1"], params["bb1"])
    ff = jnp.maximum(h1 @ params["wf1"] + params["bf1"], 0.0) @ params["wf2"] + params["bf2"]
    h2 = _layernorm(h1 + ff, params["g2"], params["bb2"])
    hh = jnp.maximum(h2 @ params["wh1"] + params["bh1"], 0.0)
    logits = hh @ params["wh2"] + params["bh2"]
    return jax.nn.sigmoid(_layernorm(logits, params["gn"], params["bn"]))


# ----------------------------- param init -------------------------------------
def init_params(key):
    ks = jax.random.split(key, 16)

    def lin(k, fan_in, fan_out):
        # deterministic synthetic init; weight stored as (in, out)
        w = jax.random.normal(k, (fan_in, fan_out), jnp.float32) * (1.0 / jnp.sqrt(fan_in))
        b = jnp.zeros((1, fan_out), jnp.float32) + 0.01
        return w, b

    p = {}
    p["embedding"] = jax.random.normal(ks[0], (VOCAB_SIZE, DMODEL), jnp.float32) * 0.1

    p["wq"], p["bq"] = lin(ks[1], DMODEL, HEADS * DQ)
    p["wk"], p["bk"] = lin(ks[2], DMODEL, HEADS * DK)
    p["wv"], p["bv"] = lin(ks[3], DMODEL, HEADS * DV)
    p["wu"], p["bu"] = lin(ks[4], HEADS * DV, DMODEL)

    p["g1"] = jnp.ones((1, DMODEL), jnp.float32)
    p["bb1"] = jnp.zeros((1, DMODEL), jnp.float32)

    p["wf1"], p["bf1"] = lin(ks[5], DMODEL, FEEDFORWARD)
    p["wf2"], p["bf2"] = lin(ks[6], FEEDFORWARD, DMODEL)

    p["g2"] = jnp.ones((1, DMODEL), jnp.float32)
    p["bb2"] = jnp.zeros((1, DMODEL), jnp.float32)

    p["wh1"], p["bh1"] = lin(ks[7], DMODEL, DHALF)
    p["wh2"], p["bh2"] = lin(ks[8], DHALF, NUM_BIO_LABELS)

    p["gn"] = jnp.ones((1, NUM_BIO_LABELS), jnp.float32)
    p["bn"] = jnp.zeros((1, NUM_BIO_LABELS), jnp.float32)
    return p


# ----------------------------- main --------------------------------------------
if __name__ == "__main__":
    key = jax.random.PRNGKey(0)
    pkey, ikey = jax.random.split(key)
    params = init_params(pkey)

    # include some indices >= VOCAB_SIZE to exercise the in-kernel UNK clamp
    input_indices = jax.random.randint(ikey, (D_BATCH, SEQ_N), 0, VOCAB_SIZE + 10, jnp.int32)

    out = genia_transformer(input_indices, params)
    out = jax.block_until_ready(out)

    ref = jax.block_until_ready(genia_reference(input_indices, params))
    assert out.shape == (D_BATCH, SEQ_N, NUM_BIO_LABELS)
    assert jnp.allclose(out, ref, atol=1e-4, rtol=1e-4), "Pallas output mismatch vs reference"

    print("KERNEL_OK")
</pallas_src>

<mosaic_0001>
module attributes {stable_mosaic.version = 11 : i64} {
  func.func @genia_kernel(%arg0: i32, %arg1: memref<1x16x1xi32, #tpu.memory_space<vmem>>, %arg2: memref<16x32xf32, #tpu.memory_space<vmem>>, %arg3: memref<64x32xf32, #tpu.memory_space<vmem>>, %arg4: memref<32x96xf32, #tpu.memory_space<vmem>>, %arg5: memref<32x112xf32, #tpu.memory_space<vmem>>, %arg6: memref<64x32xf32, #tpu.memory_space<vmem>>, %arg7: memref<16x128xf32, #tpu.memory_space<vmem>>, %arg8: memref<16x128xf32, #tpu.memory_space<vmem>>, %arg9: memref<1x16x128xf32, #tpu.memory_space<vmem>>) attributes {dimension_semantics = [#tpu.dimension_semantics<parallel>], iteration_bounds = array<i64: 1>, scalar_prefetch = 0 : i64, scratch_operands = 0 : i64, tpu.core_type = #tpu.core_type<tc>, window_params = [{transform_indices = @transform_0, window_bounds = array<i64: 1, 16, 1>}, {pipeline_mode = #tpu.pipeline_mode<synchronous>, transform_indices = @transform_1, window_bounds = array<i64: 16, 32>}, {pipeline_mode = #tpu.pipeline_mode<synchronous>, transform_indices = @transform_2, window_bounds = array<i64: 64, 32>}, {pipeline_mode = #tpu.pipeline_mode<synchronous>, transform_indices = @transform_3, window_bounds = array<i64: 32, 96>}, {pipeline_mode = #tpu.pipeline_mode<synchronous>, transform_indices = @transform_4, window_bounds = array<i64: 32, 112>}, {pipeline_mode = #tpu.pipeline_mode<synchronous>, transform_indices = @transform_5, window_bounds = array<i64: 64, 32>}, {pipeline_mode = #tpu.pipeline_mode<synchronous>, transform_indices = @transform_6, window_bounds = array<i64: 16, 128>}, {pipeline_mode = #tpu.pipeline_mode<synchronous>, transform_indices = @transform_7, window_bounds = array<i64: 16, 128>}, {transform_indices = @transform_8, window_bounds = array<i64: 1, 16, 128>}]} {
    %c0 = arith.constant 0 : index
    %c0_0 = arith.constant 0 : index
    %c0_1 = arith.constant 0 : index
    %0 = vector.load %arg1[%c0, %c0_0, %c0_1] : memref<1x16x1xi32, #tpu.memory_space<vmem>>, vector<1x16x1xi32>
    %1 = vector.shape_cast %0 : vector<1x16x1xi32> to vector<16x1xi32>
    %c50_i32 = arith.constant 50 : i32
    %2 = vector.broadcast %c50_i32 : i32 to vector<16x1xi32>
    %3 = arith.cmpi sge, %1, %2 : vector<16x1xi32>
    %c1_i32 = arith.constant 1 : i32
    %4 = vector.broadcast %c1_i32 : i32 to vector<16x1xi32>
    %5 = arith.select %3, %4, %1 : vector<16x1xi1>, vector<16x1xi32>
    %6 = tpu.iota {dimensions = array<i32: 1>} : vector<16x64xi32>
    %7 = vector.broadcast %5 : vector<16x1xi32> to vector<16x64xi32>
    %8 = arith.cmpi eq, %7, %6 : vector<16x64xi32>
    %9 = arith.extui %8 : vector<16x64xi1> to vector<16x64xi32>
    %10 = arith.sitofp %9 : vector<16x64xi32> to vector<16x64xf32>
    %c0_2 = arith.constant 0 : index
    %c0_3 = arith.constant 0 : index
    %11 = vector.load %arg3[%c0_2, %c0_3] : memref<64x32xf32, #tpu.memory_space<vmem>>, vector<64x32xf32>
    %cst = arith.constant dense<0.000000e+00> : vector<16x32xf32>
    %12 = tpu.matmul %10, %11, %cst {dimension_numbers = #tpu.dot_dimension_numbers<[1], [0], [0], [1], [0, 0, 1, 1], [], []>} : vector<16x64xf32>, vector<64x32xf32>, vector<16x32xf32> -> vector<16x32xf32>
    %c0_4 = arith.constant 0 : index
    %c0_5 = arith.constant 0 : index
    %13 = vector.load %arg2[%c0_4, %c0_5] : memref<16x32xf32, #tpu.memory_space<vmem>>, vector<16x32xf32>
    %14 = arith.addf %12, %13 : vector<16x32xf32>
    %c0_6 = arith.constant 0 : index
    %c0_7 = arith.constant 0 : index
    %15 = vector.load %arg4[%c0_6, %c0_7] : memref<32x96xf32, #tpu.memory_space<vmem>>, vector<32x96xf32>
    %cst_8 = arith.constant dense<0.000000e+00> : vector<16x96xf32>
    %16 = tpu.matmul %14, %15, %cst_8 {dimension_numbers = #tpu.dot_dimension_numbers<[1], [0], [0], [1], [0, 0, 1, 1], [], []>} : vector<16x32xf32>, vector<32x96xf32>, vector<16x96xf32> -> vector<16x96xf32>
    %c0_9 = arith.constant 0 : index
    %c0_10 = arith.constant 0 : index
    %17 = vector.load %arg8[%c0_9, %c0_10] : memref<16x128xf32, #tpu.memory_space<vmem>>, vector<1x96xf32>
    %18 = vector.broadcast %17 : vector<1x96xf32> to vector<16x96xf32>
    %19 = arith.addf %16, %18 : vector<16x96xf32>
    %20 = vector.shape_cast %19 : vector<16x96xf32> to vector<2x8x96xf32>
    %21 = vector.extract_strided_slice %20 {offsets = [0, 0, 0], sizes = [2, 8, 32], strides = [1, 1, 1]} : vector<2x8x96xf32> to vector<2x8x32xf32>
    %cst_11 = arith.constant 0.353553385 : f32
    %22 = vector.broadcast %cst_11 : f32 to vector<2x8x32xf32>
    %23 = arith.mulf %21, %22 : vector<2x8x32xf32>
    %24 = vector.extract_strided_slice %20 {offsets = [0, 0, 32], sizes = [2, 8, 32], strides = [1, 1, 1]} : vector<2x8x96xf32> to vector<2x8x32xf32>
    %25 = vector.extract_strided_slice %20 {offsets = [0, 0, 64], sizes = [2, 8, 32], strides = [1, 1, 1]} : vector<2x8x96xf32> to vector<2x8x32xf32>
    "tpu.trace_start"() <{level = 10 : i32, message = "bqd,bkd->bqk"}> : () -> ()
    %cst_12 = arith.constant dense<0.000000e+00> : vector<2x8x8xf32>
    %26 = tpu.matmul %23, %24, %cst_12 {dimension_numbers = #tpu.dot_dimension_numbers<[2], [2], [1], [1], [0, 0, 0, 1, 1, 1], [0], [0]>} : vector<2x8x32xf32>, vector<2x8x32xf32>, vector<2x8x8xf32> -> vector<2x8x8xf32>
    "tpu.trace_stop"() : () -> ()
    "tpu.trace_start"() <{level = 10 : i32, message = "bqk,bkd->bqd"}> : () -> ()
    %cst_13 = arith.constant dense<0.000000e+00> : vector<2x8x32xf32>
    %27 = tpu.matmul %26, %25, %cst_13 {dimension_numbers = #tpu.dot_dimension_numbers<[2], [1], [1], [2], [0, 0, 0, 1, 1, 2], [0], [0]>} : vector<2x8x8xf32>, vector<2x8x32xf32>, vector<2x8x32xf32> -> vector<2x8x32xf32>
    "tpu.trace_stop"() : () -> ()
    %28 = vector.shape_cast %27 : vector<2x8x32xf32> to vector<16x32xf32>
    %c0_14 = arith.constant 0 : index
    %c0_15 = arith.constant 0 : index
    %29 = vector.load %arg5[%c0_14, %c0_15] : memref<32x112xf32, #tpu.memory_space<vmem>>, vector<32x32xf32>
    %c0_16 = arith.constant 0 : index
    %c32 = arith.constant 32 : index
    %30 = vector.load %arg5[%c0_16, %c32] : memref<32x112xf32, #tpu.memory_space<vmem>>, vector<32x64xf32>
    %c0_17 = arith.constant 0 : index
    %c96 = arith.constant 96 : index
    %31 = vector.load %arg5[%c0_17, %c96] : memref<32x112xf32, #tpu.memory_space<vmem>>, vector<32x16xf32>
    %cst_18 = arith.constant dense<0.000000e+00> : vector<16x32xf32>
    %32 = tpu.matmul %28, %29, %cst_18 {dimension_numbers = #tpu.dot_dimension_numbers<[1], [0], [0], [1], [0, 0, 1, 1], [], []>} : vector<16x32xf32>, vector<32x32xf32>, vector<16x32xf32> -> vector<16x32xf32>
    %c1 = arith.constant 1 : index
    %c0_19 = arith.constant 0 : index
    %33 = vector.load %arg8[%c1, %c0_19] : memref<16x128xf32, #tpu.memory_space<vmem>>, vector<1x32xf32>
    %34 = vector.broadcast %33 : vector<1x32xf32> to vector<16x32xf32>
    %35 = arith.addf %32, %34 : vector<16x32xf32>
    %36 = arith.addf %14, %35 : vector<16x32xf32>
    %c2 = arith.constant 2 : index
    %c0_20 = arith.constant 0 : index
    %37 = vector.load %arg8[%c2, %c0_20] : memref<16x128xf32, #tpu.memory_space<vmem>>, vector<1x32xf32>
    %c3 = arith.constant 3 : index
    %c0_21 = arith.constant 0 : index
    %38 = vector.load %arg8[%c3, %c0_21] : memref<16x128xf32, #tpu.memory_space<vmem>>, vector<1x32xf32>
    %cst_22 = arith.constant dense<0.000000e+00> : vector<16xf32>
    %39 = vector.multi_reduction <add>, %36, %cst_22 [1] : vector<16x32xf32> to vector<16xf32>
    %40 = vector.shape_cast %39 : vector<16xf32> to vector<16x1xf32>
    %cst_23 = arith.constant 3.200000e+01 : f32
    %41 = vector.broadcast %cst_23 : f32 to vector<16x1xf32>
    %42 = arith.divf %40, %41 : vector<16x1xf32>
    %43 = vector.broadcast %42 : vector<16x1xf32> to vector<16x32xf32>
    %44 = arith.subf %36, %43 : vector<16x32xf32>
    %45 = arith.mulf %44, %44 : vector<16x32xf32>
    %cst_24 = arith.constant dense<0.000000e+00> : vector<16xf32>
    %46 = vector.multi_reduction <add>, %45, %cst_24 [1] : vector<16x32xf32> to vector<16xf32>
    %47 = vector.shape_cast %46 : vector<16xf32> to vector<16x1xf32>
    %cst_25 = arith.constant 3.200000e+01 : f32
    %48 = vector.broadcast %cst_25 : f32 to vector<16x1xf32>
    %49 = arith.divf %47, %48 : vector<16x1xf32>
    %50 = vector.broadcast %42 : vector<16x1xf32> to vector<16x32xf32>
    %51 = arith.subf %36, %50 : vector<16x32xf32>
    %cst_26 = arith.constant 9.99999974E-6 : f32
    %52 = vector.broadcast %cst_26 : f32 to vector<16x1xf32>
    %53 = arith.addf %49, %52 : vector<16x1xf32>
    %54 = math.rsqrt %53 : vector<16x1xf32>
    %55 = vector.broadcast %54 : vector<16x1xf32> to vector<16x32xf32>
    %56 = arith.mulf %51, %55 : vector<16x32xf32>
    %57 = vector.broadcast %37 : vector<1x32xf32> to vector<16x32xf32>
    %58 = arith.mulf %56, %57 : vector<16x32xf32>
    %59 = vector.broadcast %38 : vector<1x32xf32> to vector<16x32xf32>
    %60 = arith.addf %58, %59 : vector<16x32xf32>
    %cst_27 = arith.constant dense<0.000000e+00> : vector<16x64xf32>
    %61 = tpu.matmul %60, %30, %cst_27 {dimension_numbers = #tpu.dot_dimension_numbers<[1], [0], [0], [1], [0, 0, 1, 1], [], []>} : vector<16x32xf32>, vector<32x64xf32>, vector<16x64xf32> -> vector<16x64xf32>
    %c4 = arith.constant 4 : index
    %c0_28 = arith.constant 0 : index
    %62 = vector.load %arg8[%c4, %c0_28] : memref<16x128xf32, #tpu.memory_space<vmem>>, vector<1x64xf32>
    %63 = vector.broadcast %62 : vector<1x64xf32> to vector<16x64xf32>
    %64 = arith.addf %61, %63 : vector<16x64xf32>
    %cst_29 = arith.constant 0.000000e+00 : f32
    %65 = vector.broadcast %cst_29 : f32 to vector<16x64xf32>
    %66 = arith.maximumf %64, %65 : vector<16x64xf32>
    %c0_30 = arith.constant 0 : index
    %c0_31 = arith.constant 0 : index
    %67 = vector.load %arg6[%c0_30, %c0_31] : memref<64x32xf32, #tpu.memory_space<vmem>>, vector<64x32xf32>
    %cst_32 = arith.constant dense<0.000000e+00> : vector<16x32xf32>
    %68 = tpu.matmul %66, %67, %cst_32 {dimension_numbers = #tpu.dot_dimension_numbers<[1], [0], [0], [1], [0, 0, 1, 1], [], []>} : vector<16x64xf32>, vector<64x32xf32>, vector<16x32xf32> -> vector<16x32xf32>
    %c5 = arith.constant 5 : index
    %c0_33 = arith.constant 0 : index
    %69 = vector.load %arg8[%c5, %c0_33] : memref<16x128xf32, #tpu.memory_space<vmem>>, vector<1x32xf32>
    %70 = vector.broadcast %69 : vector<1x32xf32> to vector<16x32xf32>
    %71 = arith.addf %68, %70 : vector<16x32xf32>
    %72 = arith.addf %60, %71 : vector<16x32xf32>
    %c6 = arith.constant 6 : index
    %c0_34 = arith.constant 0 : index
    %73 = vector.load %arg8[%c6, %c0_34] : memref<16x128xf32, #tpu.memory_space<vmem>>, vector<1x32xf32>
    %c7 = arith.constant 7 : index
    %c0_35 = arith.constant 0 : index
    %74 = vector.load %arg8[%c7, %c0_35] : memref<16x128xf32, #tpu.memory_space<vmem>>, vector<1x32xf32>
    %cst_36 = arith.constant dense<0.000000e+00> : vector<16xf32>
    %75 = vector.multi_reduction <add>, %72, %cst_36 [1] : vector<16x32xf32> to vector<16xf32>
    %76 = vector.shape_cast %75 : vector<16xf32> to vector<16x1xf32>
    %cst_37 = arith.constant 3.200000e+01 : f32
    %77 = vector.broadcast %cst_37 : f32 to vector<16x1xf32>
    %78 = arith.divf %76, %77 : vector<16x1xf32>
    %79 = vector.broadcast %78 : vector<16x1xf32> to vector<16x32xf32>
    %80 = arith.subf %72, %79 : vector<16x32xf32>
    %81 = arith.mulf %80, %80 : vector<16x32xf32>
    %cst_38 = arith.constant dense<0.000000e+00> : vector<16xf32>
    %82 = vector.multi_reduction <add>, %81, %cst_38 [1] : vector<16x32xf32> to vector<16xf32>
    %83 = vector.shape_cast %82 : vector<16xf32> to vector<16x1xf32>
    %cst_39 = arith.constant 3.200000e+01 : f32
    %84 = vector.broadcast %cst_39 : f32 to vector<16x1xf32>
    %85 = arith.divf %83, %84 : vector<16x1xf32>
    %86 = vector.broadcast %78 : vector<16x1xf32> to vector<16x32xf32>
    %87 = arith.subf %72, %86 : vector<16x32xf32>
    %cst_40 = arith.constant 9.99999974E-6 : f32
    %88 = vector.broadcast %cst_40 : f32 to vector<16x1xf32>
    %89 = arith.addf %85, %88 : vector<16x1xf32>
    %90 = math.rsqrt %89 : vector<16x1xf32>
    %91 = vector.broadcast %90 : vector<16x1xf32> to vector<16x32xf32>
    %92 = arith.mulf %87, %91 : vector<16x32xf32>
    %93 = vector.broadcast %73 : vector<1x32xf32> to vector<16x32xf32>
    %94 = arith.mulf %92, %93 : vector<16x32xf32>
    %95 = vector.broadcast %74 : vector<1x32xf32> to vector<16x32xf32>
    %96 = arith.addf %94, %95 : vector<16x32xf32>
    %cst_41 = arith.constant dense<0.000000e+00> : vector<16x16xf32>
    %97 = tpu.matmul %96, %31, %cst_41 {dimension_numbers = #tpu.dot_dimension_numbers<[1], [0], [0], [1], [0, 0, 1, 1], [], []>} : vector<16x32xf32>, vector<32x16xf32>, vector<16x16xf32> -> vector<16x16xf32>
    %c8 = arith.constant 8 : index
    %c0_42 = arith.constant 0 : index
    %98 = vector.load %arg8[%c8, %c0_42] : memref<16x128xf32, #tpu.memory_space<vmem>>, vector<1x16xf32>
    %99 = vector.broadcast %98 : vector<1x16xf32> to vector<16x16xf32>
    %100 = arith.addf %97, %99 : vector<16x16xf32>
    %cst_43 = arith.constant 0.000000e+00 : f32
    %101 = vector.broadcast %cst_43 : f32 to vector<16x16xf32>
    %102 = arith.maximumf %100, %101 : vector<16x16xf32>
    %c0_44 = arith.constant 0 : index
    %c0_45 = arith.constant 0 : index
    %103 = vector.load %arg7[%c0_44, %c0_45] : memref<16x128xf32, #tpu.memory_space<vmem>>, vector<16x128xf32>
    %cst_46 = arith.constant dense<0.000000e+00> : vector<16x128xf32>
    %104 = tpu.matmul %102, %103, %cst_46 {dimension_numbers = #tpu.dot_dimension_numbers<[1], [0], [0], [1], [0, 0, 1, 1], [], []>} : vector<16x16xf32>, vector<16x128xf32>, vector<16x128xf32> -> vector<16x128xf32>
    %c9 = arith.constant 9 : index
    %c0_47 = arith.constant 0 : index
    %105 = vector.load %arg8[%c9, %c0_47] : memref<16x128xf32, #tpu.memory_space<vmem>>, vector<1x128xf32>
    %106 = vector.broadcast %105 : vector<1x128xf32> to vector<16x128xf32>
    %107 = arith.addf %104, %106 : vector<16x128xf32>
    %108 = tpu.iota {dimensions = array<i32: 1>} : vector<16x128xi32>
    %c77_i32 = arith.constant 77 : i32
    %109 = vector.broadcast %c77_i32 : i32 to vector<16x128xi32>
    %110 = arith.cmpi slt, %108, %109 : vector<16x128xi32>
    %111 = arith.extui %110 : vector<16x128xi1> to vector<16x128xi32>
    %112 = arith.sitofp %111 : vector<16x128xi32> to vector<16x128xf32>
    %113 = arith.mulf %107, %112 : vector<16x128xf32>
    %cst_48 = arith.constant dense<0.000000e+00> : vector<16xf32>
    %114 = vector.multi_reduction <add>, %113, %cst_48 [1] : vector<16x128xf32> to vector<16xf32>
    %115 = vector.shape_cast %114 : vector<16xf32> to vector<16x1xf32>
    %cst_49 = arith.constant 7.700000e+01 : f32
    %116 = vector.broadcast %cst_49 : f32 to vector<16x1xf32>
    %117 = arith.divf %115, %116 : vector<16x1xf32>
    %118 = vector.broadcast %117 : vector<16x1xf32> to vector<16x128xf32>
    %119 = arith.subf %107, %118 : vector<16x128xf32>
    %120 = arith.mulf %119, %119 : vector<16x128xf32>
    %121 = arith.mulf %120, %112 : vector<16x128xf32>
    %cst_50 = arith.constant dense<0.000000e+00> : vector<16xf32>
    %122 = vector.multi_reduction <add>, %121, %cst_50 [1] : vector<16x128xf32> to vector<16xf32>
    %123 = vector.shape_cast %122 : vector<16xf32> to vector<16x1xf32>
    %cst_51 = arith.constant 7.700000e+01 : f32
    %124 = vector.broadcast %cst_51 : f32 to vector<16x1xf32>
    %125 = arith.divf %123, %124 : vector<16x1xf32>
    %126 = vector.broadcast %117 : vector<16x1xf32> to vector<16x128xf32>
    %127 = arith.subf %107, %126 : vector<16x128xf32>
    %cst_52 = arith.constant 9.99999974E-6 : f32
    %128 = vector.broadcast %cst_52 : f32 to vector<16x1xf32>
    %129 = arith.addf %125, %128 : vector<16x1xf32>
    %130 = math.rsqrt %129 : vector<16x1xf32>
    %131 = vector.broadcast %130 : vector<16x1xf32> to vector<16x128xf32>
    %132 = arith.mulf %127, %131 : vector<16x128xf32>
    %c10 = arith.constant 10 : index
    %c0_53 = arith.constant 0 : index
    %133 = vector.load %arg8[%c10, %c0_53] : memref<16x128xf32, #tpu.memory_space<vmem>>, vector<1x128xf32>
    %134 = vector.broadcast %133 : vector<1x128xf32> to vector<16x128xf32>
    %135 = arith.mulf %132, %134 : vector<16x128xf32>
    %c11 = arith.constant 11 : index
    %c0_54 = arith.constant 0 : index
    %136 = vector.load %arg8[%c11, %c0_54] : memref<16x128xf32, #tpu.memory_space<vmem>>, vector<1x128xf32>
    %137 = vector.broadcast %136 : vector<1x128xf32> to vector<16x128xf32>
    %138 = arith.addf %135, %137 : vector<16x128xf32>
    %139 = arith.negf %138 : vector<16x128xf32>
    %140 = math.exp %139 : vector<16x128xf32>
    %cst_55 = arith.constant 1.000000e+00 : f32
    %141 = vector.broadcast %cst_55 : f32 to vector<16x128xf32>
    %142 = arith.addf %141, %140 : vector<16x128xf32>
    %143 = arith.divf %141, %142 : vector<16x128xf32>
    %c0_56 = arith.constant 0 : index
    %c0_57 = arith.constant 0 : index
    %c0_58 = arith.constant 0 : index
    %144 = vector.load %arg9[%c0_56, %c0_57, %c0_58] : memref<1x16x128xf32, #tpu.memory_space<vmem>>, vector<1x16x128xf32>
    %145 = vector.shape_cast %144 : vector<1x16x128xf32> to vector<16x128xf32>
    %146 = vector.shape_cast %143 : vector<16x128xf32> to vector<1x16x128xf32>
    tpu.vector_store %arg9[%c0_56, %c0_57, %c0_58], %146 {strides = array<i32>} : memref<1x16x128xf32, #tpu.memory_space<vmem>>, vector<1x16x128xf32>,
    return
  }
  func.func @transform_0(%arg0: i32) -> (i32, i32, i32) {
    %c0_i32 = arith.constant 0 : i32
    %c0_i32_0 = arith.constant 0 : i32
    %c0_i32_1 = arith.constant 0 : i32
    return %arg0, %c0_i32, %c0_i32_0 : i32, i32, i32
  }
  func.func @transform_1(%arg0: i32) -> (i32, i32) {
    %c0_i32 = arith.constant 0 : i32
    %c0_i32_0 = arith.constant 0 : i32
    %c0_i32_1 = arith.constant 0 : i32
    return %c0_i32, %c0_i32_0 : i32, i32
  }
  func.func @transform_2(%arg0: i32) -> (i32, i32) {
    %c0_i32 = arith.constant 0 : i32
    %c0_i32_0 = arith.constant 0 : i32
    %c0_i32_1 = arith.constant 0 : i32
    return %c0_i32, %c0_i32_0 : i32, i32
  }
  func.func @transform_3(%arg0: i32) -> (i32, i32) {
    %c0_i32 = arith.constant 0 : i32
    %c0_i32_0 = arith.constant 0 : i32
    %c0_i32_1 = arith.constant 0 : i32
    return %c0_i32, %c0_i32_0 : i32, i32
  }
  func.func @transform_4(%arg0: i32) -> (i32, i32) {
    %c0_i32 = arith.constant 0 : i32
    %c0_i32_0 = arith.constant 0 : i32
    %c0_i32_1 = arith.constant 0 : i32
    return %c0_i32, %c0_i32_0 : i32, i32
  }
  func.func @transform_5(%arg0: i32) -> (i32, i32) {
    %c0_i32 = arith.constant 0 : i32
    %c0_i32_0 = arith.constant 0 : i32
    %c0_i32_1 = arith.constant 0 : i32
    return %c0_i32, %c0_i32_0 : i32, i32
  }
  func.func @transform_6(%arg0: i32) -> (i32, i32) {
    %c0_i32 = arith.constant 0 : i32
    %c0_i32_0 = arith.constant 0 : i32
    %c0_i32_1 = arith.constant 0 : i32
    return %c0_i32, %c0_i32_0 : i32, i32
  }
  func.func @transform_7(%arg0: i32) -> (i32, i32) {
    %c0_i32 = arith.constant 0 : i32
    %c0_i32_0 = arith.constant 0 : i32
    %c0_i32_1 = arith.constant 0 : i32
    return %c0_i32, %c0_i32_0 : i32, i32
  }
  func.func @transform_8(%arg0: i32) -> (i32, i32, i32) {
    %c0_i32 = arith.constant 0 : i32
    %c0_i32_0 = arith.constant 0 : i32
    %c0_i32_1 = arith.constant 0 : i32
    return %arg0, %c0_i32, %c0_i32_0 : i32, i32, i32
  }
}

</mosaic_0001>

<llo_original>
// kernel: tpu_custom_call.1
$region0: #{tpu_custom_call.1}
  #allocation0 [shape = 'u32[]', space=smem, size = 0x4, offset = 0x4, fixed_abs, tag = 'smem constant byte address 0x4 - core index']
  #allocation1 [shape = 'u32[72,128]{1,0:T(1,128)}', space=vmem, size = 0x9000, scoped, tag = 'internal scratch']
  %s0 = inlined_call_operand.vmem [shape: s32[1,16,1], index: 0, kind: input, shape index: {}]
  %s1 = inlined_call_operand.vmem [shape: f32[16,32], index: 1, kind: input, shape index: {}]
  %s2 = inlined_call_operand.vmem [shape: f32[64,32], index: 2, kind: input, shape index: {}]
  %s3 = inlined_call_operand.vmem [shape: f32[32,96], index: 3, kind: input, shape index: {}]
  %s4 = inlined_call_operand.vmem [shape: f32[32,112], index: 4, kind: input, shape index: {}]
  %s5 = inlined_call_operand.vmem [shape: f32[64,32], index: 5, kind: input, shape index: {}]
  %s6 = inlined_call_operand.vmem [shape: f32[16,128], index: 6, kind: input, shape index: {}]
  %s7 = inlined_call_operand.vmem [shape: f32[16,128], index: 7, kind: input, shape index: {}]
  %s8 = inlined_call_operand.hbm [shape: f32[1,16,128], index: 8, kind: output, shape index: {}]
  %s9 = sld [smem:[#allocation0]]
  $region42: #{tpu_custom_call.1} parent=0
    _
  %s11 = ssub.s32 1, %s9
  %s12 = scalar_select 0, %s11, %s9
  $region1: #{tpu_custom_call.1} parent=0
    #allocation2 [shape = 'u8[8192]{0}', space=vmem, size = 0x2000, scoped, tag = 'output window, operand 0, single buffered']
    #allocation3 [shape = 's32[1]{0}', space=sflag, size = 0x4, scoped, tag = 'scoped memory for tpu_custom_call.1']
    %13 = vsyncpa [#allocation3], 0
    // Predicated region
    $region2: #{tpu_custom_call.1} parent=1 // pred_check
      _
    $region3: #{tpu_custom_call.1} parent=1 // pred_check_branch
      %15 = sbr.rel (0) target = $region5
    $region4: #{tpu_custom_call.1} parent=1 // pred_region
      _
    $region5: #{tpu_custom_call.1} parent=1 // pred_fallthru
      _
    // Predicated region
    $region6: #{tpu_custom_call.1} parent=1 // pred_check
      _
    $region7: #{tpu_custom_call.1} parent=1 // pred_check_branch
      %17 = sbr.rel (0) target = $region9
    $region8: #{tpu_custom_call.1} parent=1 // pred_region
      _
    $region9: #{tpu_custom_call.1} parent=1 // pred_fallthru
      _
    // Predicated region
    $region10: #{tpu_custom_call.1} parent=1 // pred_check
      _
    $region11: #{tpu_custom_call.1} parent=1 // pred_check_branch
      %19 = sbr.rel (0) target = $region13
    $region12: #{tpu_custom_call.1} parent=1 // pred_region
      _
    $region13: #{tpu_custom_call.1} parent=1 // pred_fallthru
      _
    // Predicated region
    $region14: #{tpu_custom_call.1} parent=1 // pred_check
      _
    $region15: #{tpu_custom_call.1} parent=1 // pred_check_branch
      %21 = sbr.rel (0) target = $region17
    $region16: #{tpu_custom_call.1} parent=1 // pred_region
      _
    $region17: #{tpu_custom_call.1} parent=1 // pred_fallthru
      _
    // Predicated region
    $region18: #{tpu_custom_call.1} parent=1 // pred_check
      _
    $region19: #{tpu_custom_call.1} parent=1 // pred_check_branch
      %23 = sbr.rel (0) target = $region21
    $region20: #{tpu_custom_call.1} parent=1 // pred_region
      _
    $region21: #{tpu_custom_call.1} parent=1 // pred_fallthru
      _
    // Predicated region
    $region22: #{tpu_custom_call.1} parent=1 // pred_check
      _
    $region23: #{tpu_custom_call.1} parent=1 // pred_check_branch
      %25 = sbr.rel (0) target = $region25
    $region24: #{tpu_custom_call.1} parent=1 // pred_region
      _
    $region25: #{tpu_custom_call.1} parent=1 // pred_fallthru
      _
    // Predicated region
    $region26: #{tpu_custom_call.1} parent=1 // pred_check
      _
    $region27: #{tpu_custom_call.1} parent=1 // pred_check_branch
      %27 = sbr.rel (0) target = $region29
    $region28: #{tpu_custom_call.1} parent=1 // pred_region
      _
    $region29: #{tpu_custom_call.1} parent=1 // pred_fallthru
      _
    // Predicated region
    $region30: #{tpu_custom_call.1} parent=1 // pred_check
      _
    $region31: #{tpu_custom_call.1} parent=1 // pred_check_branch
      %29 = sbr.rel (0) target = $region33
    $region32: #{tpu_custom_call.1} parent=1 // pred_region
      _
    $region33: #{tpu_custom_call.1} parent=1 // pred_fallthru
      _
    %v30 = vld [vmem:[%s0] sm:$0xff]
    %v31 = vld [vmem:[%s0 + $0x8] sm:$0xff]
    %vm32 = vcmp.ge.s32.totalorder %v30, 50
    %vm33 = vcmp.ge.s32.totalorder %v31, 50
    %v34 = vsel %vm32, 1, %v30
    %v35 = vsel %vm33, 1, %v31
    %v36 = vlaneseq
    %v37 = vand.u32 %v36, 127
    %38 = vset.pattern.permute.xlu0 0
    %39 = vperm.xlu0 %38, %v34
    %v40 = vpop.permute.xlu0 %39
    %41 = vset.pattern.permute.xlu0 0
    %42 = vperm.xlu0 %41, %v35
    %v43 = vpop.permute.xlu0 %42
    %vm44 = vcmp.eq.s32.totalorder %v40, %v37
    %vm45 = vcmp.eq.s32.totalorder %v43, %v37
    %v46 = vsel %vm44, 1, 0
    %v47 = vsel %vm45, 1, 0
    %v48 = vcvt.s32.f32 %v46
    %v49 = vcvt.s32.f32 %v47
    %v50 = vld [vmem:[%s2] sm:$0xff]
    %v51 = vld [vmem:[%s2 + $0x8] sm:$0xff]
    %v52 = vld [vmem:[%s2 + $0x10] sm:$0xff]
    %v53 = vld [vmem:[%s2 + $0x18] sm:$0xff]
    %v54 = vld [vmem:[%s2 + $0x20] sm:$0xff]
    %v55 = vld [vmem:[%s2 + $0x28] sm:$0xff]
    %v56 = vld [vmem:[%s2 + $0x30] sm:$0xff]
    %v57 = vld [vmem:[%s2 + $0x38] sm:$0xff]
    %v58 = vld [vmem:[%s1] sm:$0xff]
    %v59 = vld [vmem:[%s1 + $0x8] sm:$0xff]
    %vm60 = vcmask 523264
    %v62 = vsel %vm60, %v48, 0
    %v65 = vsel %vm60, %v49, 0
    %67 = vmatpush.msra.mxu0 0.0
    %68 = vmatpush.msra.mxu0 0.0
    %69 = vmatpush.msra.mxu0 0.0
    %70 = vmatpush.msra.mxu0 0.0
    %71 = vmatpush.msra.mxu0 0.0
    %72 = vmatpush.msra.mxu0 0.0
    %73 = vmatpush.msra.mxu0 0.0
    %74 = vmatpush.msra.mxu0 0.0
    %75 = vmatpush.msra.mxu0 %v57
    %76 = vmatpush.msra.mxu0 %v56
    %77 = vmatpush.msra.mxu0 %v55
    %78 = vmatpush.msra.mxu0 %v54
    %79 = vmatpush.msra.mxu0 %v53
    %80 = vmatpush.msra.mxu0 %v52
    %81 = vmatpush.msra.mxu0 %v51
    %82 = vmatpush.msra.mxu0 %v50
    %83 = vmatmul.f32.gmra.mxu0 %v62
    %v84 = vpop.f32.mrf.mxu0
    %v85 = vadd.f32 %v58, %v84
    %86 = vmatmul.f32.gmra.mxu0 %v65
    %v87 = vpop.f32.mrf.mxu0
    %v88 = vadd.f32 %v59, %v87
    %89 = vdwg.mxu0
    %v90 = vld [vmem:[%s3] sm:$0xff]
    %v91 = vld [vmem:[%s3 + $0x8] sm:$0xff]
    %v92 = vld [vmem:[%s3 + $0x10] sm:$0xff]
    %v93 = vld [vmem:[%s3 + $0x18] sm:$0xff]
    %v94 = vld [vmem:[%s7] sm:$0x1]
    %v95 = vperm.slane %v94, 0
    %vm96 = vcmask 261120
    %v98 = vsel %vm96, %v85, 0
    %v101 = vsel %vm96, %v88, 0
    %103 = vmatpush.msra.mxu0 0.0
    %104 = vmatpush.msra.mxu0 0.0
    %105 = vmatpush.msra.mxu0 0.0
    %106 = vmatpush.msra.mxu0 0.0
    %107 = vmatpush.msra.mxu0 0.0
    %108 = vmatpush.msra.mxu0 0.0
    %109 = vmatpush.msra.mxu0 0.0
    %110 = vmatpush.msra.mxu0 0.0
    %111 = vmatpush.msra.mxu0 0.0
    %112 = vmatpush.msra.mxu0 0.0
    %113 = vmatpush.msra.mxu0 0.0
    %114 = vmatpush.msra.mxu0 0.0
    %115 = vmatpush.msra.mxu0 %v93
    %116 = vmatpush.msra.mxu0 %v92
    %117 = vmatpush.msra.mxu0 %v91
    %118 = vmatpush.msra.mxu0 %v90
    %119 = vmatmul.f32.gmra.mxu0 %v98
    %v120 = vpop.f32.mrf.mxu0
    %v121 = vadd.f32 %v95, %v120
    %122 = vmatmul.f32.gmra.mxu0 %v101
    %v123 = vpop.f32.mrf.mxu0
    %v124 = vadd.f32 %v95, %v123
    %125 = vdwg.mxu0
    %v126 = vmul.f32 %v121, 0.35355338
    %v127 = vmul.f32 %v124, 0.35355338
    %129 = vrot.lane.b32.xlu0 %v121, 96
    %v130 = vpop.permute.xlu0 %129
    %v132 = vsel %vm96, %v126, 0
    %v134 = vsel %vm96, %v130, 0
    %136 = vmatpush.xpose.msra.mxu0 0.0
    %137 = vmatpush.xpose.msra.mxu0 0.0
    %138 = vmatpush.xpose.msra.mxu0 0.0
    %139 = vmatpush.xpose.msra.mxu0 0.0
    %140 = vmatpush.xpose.msra.mxu0 0.0
    %141 = vmatpush.xpose.msra.mxu0 0.0
    %142 = vmatpush.xpose.msra.mxu0 0.0
    %143 = vmatpush.xpose.msra.mxu0 0.0
    %144 = vmatpush.xpose.msra.mxu0 0.0
    %145 = vmatpush.xpose.msra.mxu0 0.0
    %146 = vmatpush.xpose.msra.mxu0 0.0
    %147 = vmatpush.xpose.msra.mxu0 0.0
    %148 = vmatpush.xpose.msra.mxu0 0.0
    %149 = vmatpush.xpose.msra.mxu0 0.0
    %150 = vmatpush.xpose.msra.mxu0 0.0
    %151 = vmatpush.xpose.msra.mxu0 %v134
    %152 = vmatmul.f32.gmra.mxu0 %v132
    %v153 = vpop.f32.mrf.mxu0
    %v154 = vadd.f32 0.0, %v153
    %155 = vdwg.mxu0
    %157 = vrot.lane.b32.xlu0 %v124, 96
    %v158 = vpop.permute.xlu0 %157
    %v160 = vsel %vm96, %v127, 0
    %v162 = vsel %vm96, %v158, 0
    %164 = vmatpush.xpose.msra.mxu0 0.0
    %165 = vmatpush.xpose.msra.mxu0 0.0
    %166 = vmatpush.xpose.msra.mxu0 0.0
    %167 = vmatpush.xpose.msra.mxu0 0.0
    %168 = vmatpush.xpose.msra.mxu0 0.0
    %169 = vmatpush.xpose.msra.mxu0 0.0
    %170 = vmatpush.xpose.msra.mxu0 0.0
    %171 = vmatpush.xpose.msra.mxu0 0.0
    %172 = vmatpush.xpose.msra.mxu0 0.0
    %173 = vmatpush.xpose.msra.mxu0 0.0
    %174 = vmatpush.xpose.msra.mxu0 0.0
    %175 = vmatpush.xpose.msra.mxu0 0.0
    %176 = vmatpush.xpose.msra.mxu0 0.0
    %177 = vmatpush.xpose.msra.mxu0 0.0
    %178 = vmatpush.xpose.msra.mxu0 0.0
    %179 = vmatpush.xpose.msra.mxu0 %v162
    %180 = vmatmul.f32.gmra.mxu0 %v160
    %v181 = vpop.f32.mrf.mxu0
    %v182 = vadd.f32 0.0, %v181
    %183 = vdwg.mxu0
    %184 = vrot.lane.b32.xlu0 %v121, 64
    %v185 = vpop.permute.xlu0 %184
    %vm187 = vcmask 64512
    %v189 = vsel %vm187, %v154, 0
    %191 = vmatpush.msra.mxu0 0.0
    %192 = vmatpush.msra.mxu0 0.0
    %193 = vmatpush.msra.mxu0 0.0
    %194 = vmatpush.msra.mxu0 0.0
    %195 = vmatpush.msra.mxu0 0.0
    %196 = vmatpush.msra.mxu0 0.0
    %197 = vmatpush.msra.mxu0 0.0
    %198 = vmatpush.msra.mxu0 0.0
    %199 = vmatpush.msra.mxu0 0.0
    %200 = vmatpush.msra.mxu0 0.0
    %201 = vmatpush.msra.mxu0 0.0
    %202 = vmatpush.msra.mxu0 0.0
    %203 = vmatpush.msra.mxu0 0.0
    %204 = vmatpush.msra.mxu0 0.0
    %205 = vmatpush.msra.mxu0 0.0
    %206 = vmatpush.msra.mxu0 %v185
    %207 = vmatmul.f32.gmra.mxu0 %v189
    %v208 = vpop.f32.mrf.mxu0
    %v209 = vadd.f32 0.0, %v208
    %210 = vdwg.mxu0
    %211 = vrot.lane.b32.xlu0 %v124, 64
    %v212 = vpop.permute.xlu0 %211
    %v215 = vsel %vm187, %v182, 0
    %217 = vmatpush.msra.mxu0 0.0
    %218 = vmatpush.msra.mxu0 0.0
    %219 = vmatpush.msra.mxu0 0.0
    %220 = vmatpush.msra.mxu0 0.0
    %221 = vmatpush.msra.mxu0 0.0
    %222 = vmatpush.msra.mxu0 0.0
    %223 = vmatpush.msra.mxu0 0.0
    %224 = vmatpush.msra.mxu0 0.0
    %225 = vmatpush.msra.mxu0 0.0
    %226 = vmatpush.msra.mxu0 0.0
    %227 = vmatpush.msra.mxu0 0.0
    %228 = vmatpush.msra.mxu0 0.0
    %229 = vmatpush.msra.mxu0 0.0
    %230 = vmatpush.msra.mxu0 0.0
    %231 = vmatpush.msra.mxu0 0.0
    %232 = vmatpush.msra.mxu0 %v212
    %233 = vmatmul.f32.gmra.mxu0 %v215
    %v234 = vpop.f32.mrf.mxu0
    %v235 = vadd.f32 0.0, %v234
    %236 = vdwg.mxu0
    %v237 = vld [vmem:[%s4] sm:$0xff]
    %v238 = vld [vmem:[%s4 + $0x8] sm:$0xff]
    %v239 = vld [vmem:[%s4 + $0x10] sm:$0xff]
    %v240 = vld [vmem:[%s4 + $0x18] sm:$0xff]
    %v241 = vld [vmem:[%s7 + $0x1] sm:$0x1]
    %v242 = vperm.slane %v241, 0
    %v244 = vsel %vm96, %v209, 0
    %v247 = vsel %vm96, %v235, 0
    %249 = vmatpush.msra.mxu0 0.0
    %250 = vmatpush.msra.mxu0 0.0
    %251 = vmatpush.msra.mxu0 0.0
    %252 = vmatpush.msra.mxu0 0.0
    %253 = vmatpush.msra.mxu0 0.0
    %254 = vmatpush.msra.mxu0 0.0
    %255 = vmatpush.msra.mxu0 0.0
    %256 = vmatpush.msra.mxu0 0.0
    %257 = vmatpush.msra.mxu0 0.0
    %258 = vmatpush.msra.mxu0 0.0
    %259 = vmatpush.msra.mxu0 0.0
    %260 = vmatpush.msra.mxu0 0.0
    %261 = vmatpush.msra.mxu0 %v240
    %262 = vmatpush.msra.mxu0 %v239
    %263 = vmatpush.msra.mxu0 %v238
    %264 = vmatpush.msra.mxu0 %v237
    %265 = vmatmul.f32.gmra.mxu0 %v244
    %v266 = vpop.f32.mrf.mxu0
    %v267 = vadd.f32 %v242, %v266
    %268 = vmatmul.f32.gmra.mxu0 %v247
    %v269 = vpop.f32.mrf.mxu0
    %v270 = vadd.f32 %v242, %v269
    %271 = vdwg.mxu0
    %v272 = vadd.f32 %v85, %v267
    %v273 = vadd.f32 %v88, %v270
    %v274 = vld [vmem:[%s7 + $0x2] sm:$0x1]
    %v275 = vld [vmem:[%s7 + $0x3] sm:$0x1]
    %v276 = vsel %vm96, %v272, 0.0
    %277 = vadd.xlane.f32.xlu0 %v276
    %v278 = vpop.xlane.xlu0 %277
    %v279 = vsel %vm96, %v273, 0.0
    %280 = vadd.xlane.f32.xlu0 %v279
    %v281 = vpop.xlane.xlu0 %280
    %v282 = vrcp.pop 32.0
    %v283 = vmul.f32 32.0, %v282
    %v284 = vsub.f32 1.0, %v283
    %v285 = vmul.f32 %v282, %v284
    %v286 = vadd.f32 %v282, %v285
    %vm287 = vweird.f32 %v282
    %v288 = vsel %vm287, %v282, %v286
    %v289 = vmul.f32 %v278, %v288
    %v290 = vmul.f32 %v281, %v288
    %v291 = vsub.f32 %v272, %v289
    %v292 = vsub.f32 %v273, %v290
    %v293 = vmul.f32 %v291, %v291
    %v294 = vmul.f32 %v292, %v292
    %v295 = vsel %vm96, %v293, 0.0
    %296 = vadd.xlane.f32.xlu0 %v295
    %v297 = vpop.xlane.xlu0 %296
    %v298 = vsel %vm96, %v294, 0.0
    %299 = vadd.xlane.f32.xlu0 %v298
    %v300 = vpop.xlane.xlu0 %299
    %v301 = vmul.f32 %v297, %v288
    %v302 = vmul.f32 %v300, %v288
    %v303 = vadd.f32 %v301, 1e-05
    %v304 = vadd.f32 %v302, 1e-05
    %v305 = vrsqrt.pop %v303
    %v306 = vmul.f32 %v305, %v303
    %v307 = vmul.f32 %v306, %v305
    %v308 = vmul.f32 0.5, %v307
    %v309 = vsub.f32 1.5, %v308
    %v310 = vmul.f32 %v305, %v309
    %vm311 = vweird.f32 %v303
    %vm312 = vweird.f32 %v305
    %vm313 = vmor %vm311, %vm312
    %v314 = vsel %vm313, %v305, %v310
    %v315 = vrsqrt.pop %v304
    %v316 = vmul.f32 %v315, %v304
    %v317 = vmul.f32 %v316, %v315
    %v318 = vmul.f32 0.5, %v317
    %v319 = vsub.f32 1.5, %v318
    %v320 = vmul.f32 %v315, %v319
    %vm321 = vweird.f32 %v304
    %vm322 = vweird.f32 %v315
    %vm323 = vmor %vm321, %vm322
    %v324 = vsel %vm323, %v315, %v320
    %v325 = vmul.f32 %v291, %v314
    %v326 = vmul.f32 %v292, %v324
    %v327 = vperm.slane %v274, 0
    %v328 = vmul.f32 %v325, %v327
    %v329 = vmul.f32 %v326, %v327
    %v330 = vperm.slane %v275, 0
    %v331 = vadd.f32 %v328, %v330
    %v332 = vadd.f32 %v329, %v330
    %v333 = vld [vmem:[%s7 + $0x4] sm:$0x1]
    %v334 = vperm.slane %v333, 0
    %339 = vrot.lane.b32.xlu0 %v237, 96
    %v340 = vpop.permute.xlu0 %339
    %341 = vrot.lane.b32.xlu0 %v238, 96
    %v342 = vpop.permute.xlu0 %341
    %343 = vrot.lane.b32.xlu0 %v239, 96
    %v344 = vpop.permute.xlu0 %343
    %345 = vrot.lane.b32.xlu0 %v240, 96
    %v346 = vpop.permute.xlu0 %345
    %v352 = vsel %vm96, %v331, 0
    %v355 = vsel %vm96, %v332, 0
    %357 = vmatpush.msra.mxu0 0.0
    %358 = vmatpush.msra.mxu0 0.0
    %359 = vmatpush.msra.mxu0 0.0
    %360 = vmatpush.msra.mxu0 0.0
    %361 = vmatpush.msra.mxu0 0.0
    %362 = vmatpush.msra.mxu0 0.0
    %363 = vmatpush.msra.mxu0 0.0
    %364 = vmatpush.msra.mxu0 0.0
    %365 = vmatpush.msra.mxu0 0.0
    %366 = vmatpush.msra.mxu0 0.0
    %367 = vmatpush.msra.mxu0 0.0
    %368 = vmatpush.msra.mxu0 0.0
    %369 = vmatpush.msra.mxu0 %v346
    %370 = vmatpush.msra.mxu0 %v344
    %371 = vmatpush.msra.mxu0 %v342
    %372 = vmatpush.msra.mxu0 %v340
    %373 = vmatmul.f32.gmra.mxu0 %v352
    %v374 = vpop.f32.mrf.mxu0
    %v375 = vadd.f32 %v334, %v374
    %376 = vmatmul.f32.gmra.mxu0 %v355
    %v377 = vpop.f32.mrf.mxu0
    %v378 = vadd.f32 %v334, %v377
    %379 = vdwg.mxu0
    %v380 = vmax.f32 %v375, 0.0
    %v381 = vmax.f32 %v378, 0.0
    %v382 = vld [vmem:[%s5] sm:$0xff]
    %v383 = vld [vmem:[%s5 + $0x8] sm:$0xff]
    %v384 = vld [vmem:[%s5 + $0x10] sm:$0xff]
    %v385 = vld [vmem:[%s5 + $0x18] sm:$0xff]
    %v386 = vld [vmem:[%s5 + $0x20] sm:$0xff]
    %v387 = vld [vmem:[%s5 + $0x28] sm:$0xff]
    %v388 = vld [vmem:[%s5 + $0x30] sm:$0xff]
    %v389 = vld [vmem:[%s5 + $0x38] sm:$0xff]
    %v390 = vld [vmem:[%s7 + $0x5] sm:$0x1]
    %v391 = vperm.slane %v390, 0
    %v393 = vsel %vm60, %v380, 0
    %v396 = vsel %vm60, %v381, 0
    %398 = vmatpush.msra.mxu0 0.0
    %399 = vmatpush.msra.mxu0 0.0
    %400 = vmatpush.msra.mxu0 0.0
    %401 = vmatpush.msra.mxu0 0.0
    %402 = vmatpush.msra.mxu0 0.0
    %403 = vmatpush.msra.mxu0 0.0
    %404 = vmatpush.msra.mxu0 0.0
    %405 = vmatpush.msra.mxu0 0.0
    %406 = vmatpush.msra.mxu0 %v389
    %407 = vmatpush.msra.mxu0 %v388
    %408 = vmatpush.msra.mxu0 %v387
    %409 = vmatpush.msra.mxu0 %v386
    %410 = vmatpush.msra.mxu0 %v385
    %411 = vmatpush.msra.mxu0 %v384
    %412 = vmatpush.msra.mxu0 %v383
    %413 = vmatpush.msra.mxu0 %v382
    %414 = vmatmul.f32.gmra.mxu0 %v393
    %v415 = vpop.f32.mrf.mxu0
    %v416 = vadd.f32 %v391, %v415
    %417 = vmatmul.f32.gmra.mxu0 %v396
    %v418 = vpop.f32.mrf.mxu0
    %v419 = vadd.f32 %v391, %v418
    %420 = vdwg.mxu0
    %v421 = vadd.f32 %v331, %v416
    %v422 = vadd.f32 %v332, %v419
    %v423 = vld [vmem:[%s7 + $0x6] sm:$0x1]
    %v424 = vld [vmem:[%s7 + $0x7] sm:$0x1]
    %v425 = vsel %vm96, %v421, 0.0
    %426 = vadd.xlane.f32.xlu0 %v425
    %v427 = vpop.xlane.xlu0 %426
    %v428 = vsel %vm96, %v422, 0.0
    %429 = vadd.xlane.f32.xlu0 %v428
    %v430 = vpop.xlane.xlu0 %429
    %v431 = vmul.f32 %v427, %v288
    %v432 = vmul.f32 %v430, %v288
    %v433 = vsub.f32 %v421, %v431
    %v434 = vsub.f32 %v422, %v432
    %v435 = vmul.f32 %v433, %v433
    %v436 = vmul.f32 %v434, %v434
    %v437 = vsel %vm96, %v435, 0.0
    %438 = vadd.xlane.f32.xlu0 %v437
    %v439 = vpop.xlane.xlu0 %438
    %v440 = vsel %vm96, %v436, 0.0
    %441 = vadd.xlane.f32.xlu0 %v440
    %v442 = vpop.xlane.xlu0 %441
    %v443 = vmul.f32 %v439, %v288
    %v444 = vmul.f32 %v442, %v288
    %v445 = vadd.f32 %v443, 1e-05
    %v446 = vadd.f32 %v444, 1e-05
    %v447 = vrsqrt.pop %v445
    %v448 = vmul.f32 %v447, %v445
    %v449 = vmul.f32 %v448, %v447
    %v450 = vmul.f32 0.5, %v449
    %v451 = vsub.f32 1.5, %v450
    %v452 = vmul.f32 %v447, %v451
    %vm453 = vweird.f32 %v445
    %vm454 = vweird.f32 %v447
    %vm455 = vmor %vm453, %vm454
    %v456 = vsel %vm455, %v447, %v452
    %v457 = vrsqrt.pop %v446
    %v458 = vmul.f32 %v457, %v446
    %v459 = vmul.f32 %v458, %v457
    %v460 = vmul.f32 0.5, %v459
    %v461 = vsub.f32 1.5, %v460
    %v462 = vmul.f32 %v457, %v461
    %vm463 = vweird.f32 %v446
    %vm464 = vweird.f32 %v457
    %vm465 = vmor %vm463, %vm464
    %v466 = vsel %vm465, %v457, %v462
    %v467 = vmul.f32 %v433, %v456
    %v468 = vmul.f32 %v434, %v466
    %v469 = vperm.slane %v423, 0
    %v470 = vmul.f32 %v467, %v469
    %v471 = vmul.f32 %v468, %v469
    %v472 = vperm.slane %v424, 0
    %v473 = vadd.f32 %v470, %v472
    %v474 = vadd.f32 %v471, %v472
    %v475 = vld [vmem:[%s7 + $0x8] sm:$0x1]
    %v476 = vperm.slane %v475, 0
    %477 = vrot.lane.b32.xlu0 %v237, 32
    %v478 = vpop.permute.xlu0 %477
    %479 = vrot.lane.b32.xlu0 %v238, 32
    %v480 = vpop.permute.xlu0 %479
    %481 = vrot.lane.b32.xlu0 %v239, 32
    %v482 = vpop.permute.xlu0 %481
    %483 = vrot.lane.b32.xlu0 %v240, 32
    %v484 = vpop.permute.xlu0 %483
    %v490 = vsel %vm96, %v473, 0
    %v493 = vsel %vm96, %v474, 0
    %495 = vmatpush.msra.mxu0 0.0
    %496 = vmatpush.msra.mxu0 0.0
    %497 = vmatpush.msra.mxu0 0.0
    %498 = vmatpush.msra.mxu0 0.0
    %499 = vmatpush.msra.mxu0 0.0
    %500 = vmatpush.msra.mxu0 0.0
    %501 = vmatpush.msra.mxu0 0.0
    %502 = vmatpush.msra.mxu0 0.0
    %503 = vmatpush.msra.mxu0 0.0
    %504 = vmatpush.msra.mxu0 0.0
    %505 = vmatpush.msra.mxu0 0.0
    %506 = vmatpush.msra.mxu0 0.0
    %507 = vmatpush.msra.mxu0 %v484
    %508 = vmatpush.msra.mxu0 %v482
    %509 = vmatpush.msra.mxu0 %v480
    %510 = vmatpush.msra.mxu0 %v478
    %511 = vmatmul.f32.gmra.mxu0 %v490
    %v512 = vpop.f32.mrf.mxu0
    %v513 = vadd.f32 %v476, %v512
    %514 = vmatmul.f32.gmra.mxu0 %v493
    %v515 = vpop.f32.mrf.mxu0
    %v516 = vadd.f32 %v476, %v515
    %517 = vdwg.mxu0
    %v518 = vmax.f32 %v513, 0.0
    %v519 = vmax.f32 %v516, 0.0
    %v520 = vld [vmem:[%s6] sm:$0xff]
    %v521 = vld [vmem:[%s6 + $0x8] sm:$0xff]
    %v522 = vld [vmem:[%s7 + $0x9] sm:$0x1]
    %v523 = vperm.slane %v522, 0
    %vm524 = vcmask 130048
    %v526 = vsel %vm524, %v518, 0
    %v529 = vsel %vm524, %v519, 0
    %531 = vmatpush.msra.mxu0 0.0
    %532 = vmatpush.msra.mxu0 0.0
    %533 = vmatpush.msra.mxu0 0.0
    %534 = vmatpush.msra.mxu0 0.0
    %535 = vmatpush.msra.mxu0 0.0
    %536 = vmatpush.msra.mxu0 0.0
    %537 = vmatpush.msra.mxu0 0.0
    %538 = vmatpush.msra.mxu0 0.0
    %539 = vmatpush.msra.mxu0 0.0
    %540 = vmatpush.msra.mxu0 0.0
    %541 = vmatpush.msra.mxu0 0.0
    %542 = vmatpush.msra.mxu0 0.0
    %543 = vmatpush.msra.mxu0 0.0
    %544 = vmatpush.msra.mxu0 0.0
    %545 = vmatpush.msra.mxu0 %v521
    %546 = vmatpush.msra.mxu0 %v520
    %547 = vmatmul.f32.gmra.mxu0 %v526
    %v548 = vpop.f32.mrf.mxu0
    %v549 = vadd.f32 %v523, %v548
    %550 = vmatmul.f32.gmra.mxu0 %v529
    %v551 = vpop.f32.mrf.mxu0
    %v552 = vadd.f32 %v523, %v551
    %553 = vdwg.mxu0
    %vm554 = vcmp.lt.s32.totalorder %v37, 77
    %v555 = vsel %vm554, 1, 0
    %v556 = vcvt.s32.f32 %v555
    %v557 = vmul.f32 %v549, %v556
    %v558 = vmul.f32 %v552, %v556
    %559 = vadd.xlane.f32.xlu0 %v557
    %v560 = vpop.xlane.xlu0 %559
    %561 = vadd.xlane.f32.xlu0 %v558
    %v562 = vpop.xlane.xlu0 %561
    %v563 = vrcp.pop 77.0
    %v564 = vmul.f32 77.0, %v563
    %v565 = vsub.f32 1.0, %v564
    %v566 = vmul.f32 %v563, %v565
    %v567 = vadd.f32 %v563, %v566
    %vm568 = vweird.f32 %v563
    %v569 = vsel %vm568, %v563, %v567
    %v570 = vmul.f32 %v560, %v569
    %v571 = vmul.f32 %v562, %v569
    %v572 = vsub.f32 %v549, %v570
    %v573 = vsub.f32 %v552, %v571
    %v574 = vmul.f32 %v572, %v572
    %v575 = vmul.f32 %v573, %v573
    %v576 = vmul.f32 %v574, %v556
    %v577 = vmul.f32 %v575, %v556
    %578 = vadd.xlane.f32.xlu0 %v576
    %v579 = vpop.xlane.xlu0 %578
    %580 = vadd.xlane.f32.xlu0 %v577
    %v581 = vpop.xlane.xlu0 %580
    %v582 = vmul.f32 %v579, %v569
    %v583 = vmul.f32 %v581, %v569
    %v584 = vadd.f32 %v582, 1e-05
    %v585 = vadd.f32 %v583, 1e-05
    %v586 = vrsqrt.pop %v584
    %v587 = vmul.f32 %v586, %v584
    %v588 = vmul.f32 %v587, %v586
    %v589 = vmul.f32 0.5, %v588
    %v590 = vsub.f32 1.5, %v589
    %v591 = vmul.f32 %v586, %v590
    %vm592 = vweird.f32 %v584
    %vm593 = vweird.f32 %v586
    %vm594 = vmor %vm592, %vm593
    %v595 = vsel %vm594, %v586, %v591
    %v596 = vrsqrt.pop %v585
    %v597 = vmul.f32 %v596, %v585
    %v598 = vmul.f32 %v597, %v596
    %v599 = vmul.f32 0.5, %v598
    %v600 = vsub.f32 1.5, %v599
    %v601 = vmul.f32 %v596, %v600
    %vm602 = vweird.f32 %v585
    %vm603 = vweird.f32 %v596
    %vm604 = vmor %vm602, %vm603
    %v605 = vsel %vm604, %v596, %v601
    %v606 = vmul.f32 %v572, %v595
    %v607 = vmul.f32 %v573, %v605
    %v608 = vld [vmem:[%s7 + $0xa] sm:$0x1]
    %v609 = vperm.slane %v608, 0
    %v610 = vmul.f32 %v606, %v609
    %v611 = vmul.f32 %v607, %v609
    %v612 = vld [vmem:[%s7 + $0xb] sm:$0x1]
    %v613 = vperm.slane %v612, 0
    %v614 = vadd.f32 %v610, %v613
    %v615 = vadd.f32 %v611, %v613
    %v616 = vxor.u32 %v614, 2147483648
    %v617 = vxor.u32 %v615, 2147483648
    %v618 = vmul.f32 %v616, 1.442695
    %v619 = vpow.pop %v618
    %v620 = vmul.f32 %v617, 1.442695
    %v621 = vpow.pop %v620
    %v622 = vadd.f32 %v619, 1.0
    %v623 = vadd.f32 %v621, 1.0
    %v624 = vrcp.pop %v622
    %v625 = vmul.f32 %v622, %v624
    %v626 = vsub.f32 1.0, %v625
    %v627 = vmul.f32 %v624, %v626
    %v628 = vadd.f32 %v624, %v627
    %vm629 = vweird.f32 %v622
    %vm630 = vweird.f32 %v624
    %vm631 = vmor %vm629, %vm630
    %v632 = vsel %vm631, %v624, %v628
    %v633 = vand.u32 2147483647, %v622
    %vm634 = vcmp.eq.f32.partialorder %v633, 8.507059e+37
    %v635 = vand.u32 %v622, 2147483648
    %v636 = vor.u32 1.1754944e-38, %v635
    %v637 = vsel %vm634, %v636, %v632
    %v638 = vmul.f32 1.0, %v637
    %v639 = vrcp.pop %v623
    %v640 = vmul.f32 %v623, %v639
    %v641 = vsub.f32 1.0, %v640
    %v642 = vmul.f32 %v639, %v641
    %v643 = vadd.f32 %v639, %v642
    %vm644 = vweird.f32 %v623
    %vm645 = vweird.f32 %v639
    %vm646 = vmor %vm644, %vm645
    %v647 = vsel %vm646, %v639, %v643
    %v648 = vand.u32 2147483647, %v623
    %vm649 = vcmp.eq.f32.partialorder %v648, 8.507059e+37
    %v650 = vand.u32 %v623, 2147483648
    %v651 = vor.u32 1.1754944e-38, %v650
    %v652 = vsel %vm649, %v651, %v647
    %v653 = vmul.f32 1.0, %v652
    %654 = vst [vmem:[#allocation2] sm:$0xff] %v638
    %655 = vst [vmem:[#allocation2 + $0x8] sm:$0xff] %v653
    // Predicated region
    $region34: #{tpu_custom_call.1} parent=1 // pred_check
      _
    $region35: #{tpu_custom_call.1} parent=1 // pred_check_branch
      %657 = sbr.rel (0) target = $region37
    $region36: #{tpu_custom_call.1} parent=1 // pred_region
      %659 = vsyncadd [#allocation3], 0
      %s660 = sshll.u32 [#allocation2], 4
      %s661 = int_to_ptr.vmem [resolvable:$true] %s660
      %s662 = sshll.u32 %s8, 4
      %s663 = int_to_ptr.hbm [resolvable:$true] %s662
      %668 = dma.vmem_to_hbm [thread:$0]  %s661, 256, %s663, [#allocation3], 128, 128, 8
    $region37: #{tpu_custom_call.1} parent=1 // pred_fallthru
      _
    // Predicated region
    $region38: #{tpu_custom_call.1} parent=1 // pred_check
      _
    $region39: #{tpu_custom_call.1} parent=1 // pred_check_branch
      %670 = sbr.rel (0) target = $region41
    $region40: #{tpu_custom_call.1} parent=1 // pred_region
      %672 = dma.done [#allocation3], 256
    $region41: #{tpu_custom_call.1} parent=1 // pred_fallthru
      _
    %673 = vsyncpa [#allocation3], 1

</llo_original>
